<compile_context>
chip_gen: v6e
topology: v6e:2x2x1
jax: 0.10.0
libtpu: 0.0.40
codegen_flags: <defaults>
</compile_context>

<pallas_src>
import functools

import jax
import jax.numpy as jnp
from jax import lax
from jax.experimental import pallas as pl
from jax.experimental.pallas import tpu as pltpu

# ----------------------------- config (cfg in the PyTorch module) -------------
NUM_CLASSES = 4
NEGPOS_RATIO = 3
VARIANCE = (0.1, 0.2)
OVERLAP_THRESH = 0.35

OUT_LANES = 128  # lane-dense partial-sum row per grid step
N_BISECT = 32    # bisection steps for the k-th-largest threshold search


# ----------------------------- matching glue (plain JAX) ----------------------
def point_form(boxes):
    return jnp.concatenate(
        [boxes[:, :2] - boxes[:, 2:] / 2.0, boxes[:, :2] + boxes[:, 2:] / 2.0], axis=1
    )


def jaccard(box_a, box_b):
    # box_a: (A, 4) truths (point form); box_b: (B, 4) priors (point form)
    max_xy = jnp.minimum(box_a[:, None, 2:], box_b[None, :, 2:])
    min_xy = jnp.maximum(box_a[:, None, :2], box_b[None, :, :2])
    inter_wh = jnp.maximum(max_xy - min_xy, 0.0)
    inter = inter_wh[..., 0] * inter_wh[..., 1]
    area_a = ((box_a[:, 2] - box_a[:, 0]) * (box_a[:, 3] - box_a[:, 1]))[:, None]
    area_b = ((box_b[:, 2] - box_b[:, 0]) * (box_b[:, 3] - box_b[:, 1]))[None, :]
    return inter / (area_a + area_b - inter)


def encode(matched, priors, variances):
    g_cxcy = (matched[:, :2] + matched[:, 2:]) / 2.0 - priors[:, :2]
    g_cxcy = g_cxcy / (variances[0] * priors[:, 2:])
    g_wh = (matched[:, 2:] - matched[:, :2]) / priors[:, 2:]
    g_wh = jnp.log(g_wh) / variances[1]
    return jnp.concatenate([g_cxcy, g_wh], axis=1)


def match_ssd(threshold, truths, priors, variances, labels):
    """Returns (loc_t (P,4) float32, conf_t (P,) int32) for one image."""
    # TODO(synk): padded / degenerate target rows (zero-area boxes, label 0)
    # must be masked before matching in production; the toy test has none.
    overlaps = jaccard(truths, point_form(priors))            # (num_obj, P)
    best_prior_idx = jnp.argmax(overlaps, axis=1)             # (num_obj,)
    best_truth_overlap = jnp.max(overlaps, axis=0)            # (P,)
    best_truth_idx = jnp.argmax(overlaps, axis=0)             # (P,)
    best_truth_overlap = best_truth_overlap.at[best_prior_idx].set(2.0)
    best_truth_idx = best_truth_idx.at[best_prior_idx].set(
        jnp.arange(truths.shape[0], dtype=best_truth_idx.dtype)
    )
    matches = truths[best_truth_idx]                          # (P, 4)
    conf = labels[best_truth_idx].astype(jnp.int32)           # (P,)
    conf = jnp.where(best_truth_overlap < threshold, 0, conf)
    loc = encode(matches, priors, variances)
    return loc.astype(jnp.float32), conf


# ----------------------------- Pallas kernel (hot path, TB images / step) -----
def _multibox_loss_kernel(loc_p_ref, loc_t_ref, conf_ref, conf_t_ref, out_ref,
                          *, negpos_ratio):
    # Blocks (TB images per grid step; prior axis P on lanes):
    #   loc_p_ref / loc_t_ref : (TB, 4, P) f32
    #   conf_ref              : (TB, C, P) f32
    #   conf_t_ref            : (TB, 1, P) int32
    #   out_ref               : (1, 1, OUT_LANES) f32   (block partial sums)
    TB, C, P = conf_ref.shape

    ct = conf_t_ref[...][:, 0, :]                        # (TB, P) int32
    pos = ct > 0                                         # (TB, P)
    posf = pos.astype(jnp.float32)
    num_pos = jnp.sum(posf, axis=1, keepdims=True)       # (TB, 1)

    # --- localization loss: smooth L1 over positive priors, summed -----------
    d = loc_p_ref[...] - loc_t_ref[...]                  # (TB, 4, P)
    ad = jnp.abs(d)
    sl1 = jnp.where(ad < 1.0, 0.5 * d * d, ad - 0.5)     # lane-dense
    loss_l_sum = jnp.sum(sl1 * posf[:, None, :])         # scalar

    # --- row-stabilized log-sum-exp (== global-max LSE mathematically),
    #     reused for both the mining loss and the final cross entropy --------
    conf = conf_ref[...]                                  # (TB, C, P)
    row_max = jnp.max(conf, axis=1, keepdims=True)        # (TB, 1, P)
    lse = (jnp.log(jnp.sum(jnp.exp(conf - row_max), axis=1, keepdims=True))
           + row_max)[:, 0, :]                            # (TB, P)

    cls_iota = lax.broadcasted_iota(jnp.int32, (TB, C, P), 1)
    onehot = (cls_iota == ct[:, None, :]).astype(jnp.float32)
    conf_at_t = jnp.sum(conf * onehot, axis=1)             # (TB, P)

    ce = lse - conf_at_t                                   # per-prior CE
    lc = jnp.where(pos, 0.0, ce)                           # mining loss, >= 0

    # --- hard negative mining: k-th-value threshold search (bisection) -------
    # neg = { lc >= num_neg-th largest lc }   (same tie semantics as the
    # strict-greater-count rank).  O(N_BISECT * P) lane-dense compares,
    # no scratch, no MXU, no O(P^2) work.
    num_neg = jnp.minimum(negpos_ratio * num_pos, jnp.float32(P - 1))  # (TB,1)
    lo0 = jnp.full_like(num_neg, -1.0)                     # lc >= 0 always
    hi0 = jnp.max(lc, axis=1, keepdims=True)               # (TB, 1)

    def bisect(_, carry):
        lo, hi = carry
        mid = 0.5 * (lo + hi)
        cnt = jnp.sum((lc > mid).astype(jnp.float32), axis=1, keepdims=True)
        go_up = cnt >= num_neg       # still selecting >= num_neg -> raise floor
        return jnp.where(go_up, mid, lo), jnp.where(go_up, hi, mid)

    lo, _ = lax.fori_loop(0, N_BISECT, bisect, (lo0, hi0))
    neg = (lc > lo) & (num_neg >= 1.0)                      # (TB, P)
    sel = pos | neg

    loss_c_sum = jnp.sum(jnp.where(sel, ce, 0.0))           # scalar
    num_pos_total = jnp.sum(num_pos)                        # scalar

    # --- single lane-dense (1, OUT_LANES) output row: [loss_l, loss_c, n_pos]
    lane = lax.broadcasted_iota(jnp.int32, (1, OUT_LANES), 1)
    row = (jnp.where(lane == 0, loss_l_sum, 0.0)
           + jnp.where(lane == 1, loss_c_sum, 0.0)
           + jnp.where(lane == 2, num_pos_total, 0.0))
    out_ref[...] = row[None]                                # (1, 1, OUT_LANES)


# ----------------------------- wrapper ----------------------------------------
def _pick_batch_block(batch, per_image_bytes, vmem_budget):
    """Largest TB (<=16) dividing batch s.t. grid >= 2 (when batch >= 2) and
    double-buffered input blocks stay inside the VMEM budget."""
    best = 1
    for tb in range(1, min(batch, 16) + 1):
        if batch % tb:
            continue
        if batch >= 2 and batch // tb < 2:
            continue  # keep both v7x TensorCores busy
        if 2 * tb * per_image_bytes > vmem_budget:
            continue  # double-buffered block too large
        best = tb
    return best


def multibox_loss(loc_data, conf_data, priors, targets,
                  negpos_ratio=NEGPOS_RATIO, variance=VARIANCE,
                  threshold=OVERLAP_THRESH):
    B, P, C = conf_data.shape
    priors = priors[:P, :]
    assert P % 128 == 0, "prior count must be a multiple of 128 (pad priors)"
    assert P < (1 << 24), "f32 prior counts in mining require P < 2**24"

    # matching loop (per batch element) -> (loc_t, conf_t); plain JAX glue.
    def match_one(t):
        return match_ssd(threshold, t[:, :4], priors, variance, t[:, 4])

    loc_t, conf_t = jax.vmap(match_one)(targets)
    conf_t = conf_t.astype(jnp.int32)

    # Layout plumbing: prior axis -> lane axis.  In a full model these
    # transposes should be fused into the loc/conf head producers.
    loc_p_T = jnp.transpose(loc_data.astype(jnp.float32), (0, 2, 1))   # (B, 4, P)
    loc_t_T = jnp.transpose(loc_t, (0, 2, 1))                          # (B, 4, P)
    conf_T = jnp.transpose(conf_data.astype(jnp.float32), (0, 2, 1))   # (B, C, P)
    conf_t3 = conf_t.reshape(B, 1, P)                                  # (B, 1, P)

    # VMEM-aware batch blocking (v7x: 64 MiB physical; v5e/v6e: 128 MiB).
    vmem_cap = 64 * 1024 * 1024
    try:
        vmem_cap = int(getattr(pltpu.get_tpu_info(), "vmem_capacity_bytes",
                               vmem_cap))
    except Exception:
        pass
    vmem_limit = max(min(vmem_cap // 2, 64 * 1024 * 1024), 16 * 1024 * 1024)
    per_image_bytes = 4 * P * (4 + 4 + C + 1)
    TB = _pick_batch_block(B, per_image_bytes, vmem_limit // 2)
    G = B // TB

    kernel = functools.partial(_multibox_loss_kernel,
                               negpos_ratio=float(negpos_ratio))

    flops = int(B * P * (20 + 6 * C + 4 * N_BISECT))
    transcendentals = int(B * P * (C + 1))
    bytes_accessed = int(4 * (loc_p_T.size + loc_t_T.size + conf_T.size
                              + conf_t3.size) + 4 * G * OUT_LANES)

    stats = pl.pallas_call(
        kernel,
        out_shape=jax.ShapeDtypeStruct((G, 1, OUT_LANES), jnp.float32),
        grid_spec=pltpu.PrefetchScalarGridSpec(
            num_scalar_prefetch=0,
            grid=(G,),
            in_specs=[
                pl.BlockSpec((TB, 4, P), lambda g: (g, 0, 0)),
                pl.BlockSpec((TB, 4, P), lambda g: (g, 0, 0)),
                pl.BlockSpec((TB, C, P), lambda g: (g, 0, 0)),
                pl.BlockSpec((TB, 1, P), lambda g: (g, 0, 0)),
            ],
            out_specs=pl.BlockSpec((1, 1, OUT_LANES), lambda g: (g, 0, 0)),
        ),
        compiler_params=pltpu.CompilerParams(
            dimension_semantics=("parallel",),
            vmem_limit_bytes=vmem_limit,
        ),
        cost_estimate=pl.CostEstimate(
            flops=flops, transcendentals=transcendentals,
            bytes_accessed=bytes_accessed),
    )(loc_p_T, loc_t_T, conf_T, conf_t3)

    stats = stats[:, 0, :]                    # (G, OUT_LANES)
    loss_l_sum = jnp.sum(stats[:, 0])
    loss_c_sum = jnp.sum(stats[:, 1])
    npos = jnp.sum(stats[:, 2])
    # Reference module: N = num_pos.sum() if > 0 else batch size.
    n = jnp.where(npos > 0.0, npos, jnp.float32(B))
    return loss_l_sum / n, loss_c_sum / n


# ----------------------------- pure-JAX reference (for a sanity check) --------
def _ref_loss(loc_data, conf_data, priors, targets,
              negpos_ratio=NEGPOS_RATIO, variance=VARIANCE, threshold=OVERLAP_THRESH):
    B, P, C = conf_data.shape
    loc_t, conf_t = jax.vmap(
        lambda t: match_ssd(threshold, t[:, :4], priors, variance, t[:, 4])
    )(targets)
    conf_t = conf_t.astype(jnp.int32)
    pos = conf_t > 0
    d = loc_data - loc_t
    ad = jnp.abs(d)
    sl1 = jnp.where(ad < 1.0, 0.5 * d * d, ad - 0.5)
    loss_l = jnp.sum(sl1 * pos[..., None].astype(jnp.float32))
    x_max = conf_data.max()
    lse = jnp.log(jnp.sum(jnp.exp(conf_data - x_max), -1)) + x_max
    conf_at = jnp.take_along_axis(conf_data, conf_t[..., None], axis=-1)[..., 0]
    lc = jnp.where(pos, 0.0, lse - conf_at)
    loss_idx = jnp.argsort(-lc, axis=1)
    idx_rank = jnp.argsort(loss_idx, axis=1)
    num_pos = pos.sum(1, keepdims=True)
    num_neg = jnp.minimum(negpos_ratio * num_pos, P - 1)
    neg = idx_rank < num_neg
    sel = pos | neg
    rmax = conf_data.max(-1, keepdims=True)
    lse_row = jnp.log(jnp.sum(jnp.exp(conf_data - rmax), -1)) + rmax[..., 0]
    ce = lse_row - conf_at
    loss_c = jnp.sum(jnp.where(sel, ce, 0.0))
    npos = num_pos.sum().astype(jnp.float32)
    n = jnp.where(npos > 0, npos, jnp.float32(B))
    return loss_l / n, loss_c / n


# ----------------------------- main --------------------------------------------
if __name__ == "__main__":
    B, P, C, NOBJ = 2, 128, NUM_CLASSES, 3

    key = jax.random.PRNGKey(0)
    k1, k2, k3, k4, k5 = jax.random.split(key, 5)

    # predictions
    loc_data = 0.1 * jax.random.normal(k1, (B, P, 4), dtype=jnp.float32)
    conf_data = jax.random.normal(k2, (B, P, C), dtype=jnp.float32)

    # priors: 8x8 grid, two box sizes -> 128 priors in center-offset form
    f = 8
    steps = (jnp.arange(f, dtype=jnp.float32) + 0.5) / f
    cy, cx = jnp.meshgrid(steps, steps, indexing="ij")
    centers = jnp.stack([cx.ravel(), cy.ravel()], axis=-1)            # (64, 2)
    p1 = jnp.concatenate([centers, jnp.full((64, 2), 0.10, jnp.float32)], axis=-1)
    p2 = jnp.concatenate([centers, jnp.full((64, 2), 0.20, jnp.float32)], axis=-1)
    priors = jnp.concatenate([p1, p2], axis=0)                         # (128, 4)

    # targets: (B, NOBJ, 5) = [xmin, ymin, xmax, ymax, label]
    cts = jax.random.uniform(k3, (B, NOBJ, 2), minval=0.25, maxval=0.75)
    whs = jax.random.uniform(k4, (B, NOBJ, 2), minval=0.10, maxval=0.30)
    boxes = jnp.concatenate([cts - whs / 2.0, cts + whs / 2.0], axis=-1)
    labels = jax.random.randint(k5, (B, NOBJ, 1), 1, C).astype(jnp.float32)
    targets = jnp.concatenate([boxes, labels], axis=-1)

    loss_l, loss_c = multibox_loss(loc_data, conf_data, priors, targets)
    loss_l, loss_c = jax.block_until_ready((loss_l, loss_c))

    ref_l, ref_c = _ref_loss(loc_data, conf_data, priors, targets)
    assert jnp.allclose(loss_l, ref_l, rtol=1e-3, atol=1e-3), (loss_l, ref_l)
    assert jnp.allclose(loss_c, ref_c, rtol=1e-3, atol=1e-3), (loss_c, ref_c)

    print("KERNEL_OK")
</pallas_src>

<mosaic_0001>
module attributes {stable_mosaic.version = 11 : i64} {
  func.func @_multibox_loss_kernel(%arg0: i32, %arg1: memref<1x4x128xf32, #tpu.memory_space<vmem>>, %arg2: memref<1x4x128xf32, #tpu.memory_space<vmem>>, %arg3: memref<1x4x128xf32, #tpu.memory_space<vmem>>, %arg4: memref<1x1x128xi32, #tpu.memory_space<vmem>>, %arg5: memref<1x1x128xf32, #tpu.memory_space<vmem>>) attributes {dimension_semantics = [#tpu.dimension_semantics<parallel>], iteration_bounds = array<i64: 2>, scalar_prefetch = 0 : i64, scratch_operands = 0 : i64, tpu.core_type = #tpu.core_type<tc>, window_params = [{transform_indices = @transform_0, window_bounds = array<i64: 1, 4, 128>}, {transform_indices = @transform_1, window_bounds = array<i64: 1, 4, 128>}, {transform_indices = @transform_2, window_bounds = array<i64: 1, 4, 128>}, {transform_indices = @transform_3, window_bounds = array<i64: 1, 1, 128>}, {transform_indices = @transform_4, window_bounds = array<i64: 1, 1, 128>}]} {
    %c0 = arith.constant 0 : index
    %c0_0 = arith.constant 0 : index
    %c0_1 = arith.constant 0 : index
    %0 = vector.load %arg4[%c0, %c0_0, %c0_1] : memref<1x1x128xi32, #tpu.memory_space<vmem>>, vector<1x1x128xi32>
    %1 = vector.shape_cast %0 : vector<1x1x128xi32> to vector<1x128xi32>
    %c0_i32 = arith.constant 0 : i32
    %2 = vector.broadcast %c0_i32 : i32 to vector<1x128xi32>
    %3 = arith.cmpi sgt, %1, %2 : vector<1x128xi32>
    %4 = arith.extui %3 : vector<1x128xi1> to vector<1x128xi32>
    %5 = arith.sitofp %4 : vector<1x128xi32> to vector<1x128xf32>
    %cst = arith.constant dense<0.000000e+00> : vector<1xf32>
    %6 = vector.multi_reduction <add>, %5, %cst [1] : vector<1x128xf32> to vector<1xf32>
    %7 = vector.shape_cast %6 : vector<1xf32> to vector<1x1xf32>
    %c0_2 = arith.constant 0 : index
    %c0_3 = arith.constant 0 : index
    %c0_4 = arith.constant 0 : index
    %8 = vector.load %arg1[%c0_2, %c0_3, %c0_4] : memref<1x4x128xf32, #tpu.memory_space<vmem>>, vector<1x4x128xf32>
    %c0_5 = arith.constant 0 : index
    %c0_6 = arith.constant 0 : index
    %c0_7 = arith.constant 0 : index
    %9 = vector.load %arg2[%c0_5, %c0_6, %c0_7] : memref<1x4x128xf32, #tpu.memory_space<vmem>>, vector<1x4x128xf32>
    %10 = arith.subf %8, %9 : vector<1x4x128xf32>
    %11 = math.absf %10 : vector<1x4x128xf32>
    %cst_8 = arith.constant 1.000000e+00 : f32
    %12 = vector.broadcast %cst_8 : f32 to vector<1x4x128xf32>
    %13 = arith.cmpf olt, %11, %12 : vector<1x4x128xf32>
    %cst_9 = arith.constant 5.000000e-01 : f32
    %14 = vector.broadcast %cst_9 : f32 to vector<1x4x128xf32>
    %15 = arith.mulf %14, %10 : vector<1x4x128xf32>
    %16 = arith.mulf %15, %10 : vector<1x4x128xf32>
    %cst_10 = arith.constant 5.000000e-01 : f32
    %17 = vector.broadcast %cst_10 : f32 to vector<1x4x128xf32>
    %18 = arith.subf %11, %17 : vector<1x4x128xf32>
    %19 = arith.select %13, %16, %18 : vector<1x4x128xi1>, vector<1x4x128xf32>
    %20 = vector.shape_cast %5 : vector<1x128xf32> to vector<1x1x128xf32>
    %21 = vector.broadcast %20 : vector<1x1x128xf32> to vector<1x4x128xf32>
    %22 = arith.mulf %19, %21 : vector<1x4x128xf32>
    %23 = vector.shape_cast %22 : vector<1x4x128xf32> to vector<1x1x4x128xf32>
    %cst_11 = arith.constant dense<0.000000e+00> : vector<1xf32>
    %24 = vector.multi_reduction <add>, %23, %cst_11 [1, 2, 3] : vector<1x1x4x128xf32> to vector<1xf32>
    %25 = vector.shape_cast %24 : vector<1xf32> to vector<1x1x1x1xf32>
    %26 = vector.extract %25[0, 0, 0, 0] : f32 from vector<1x1x1x1xf32>
    %c0_12 = arith.constant 0 : index
    %c0_13 = arith.constant 0 : index
    %c0_14 = arith.constant 0 : index
    %27 = vector.load %arg3[%c0_12, %c0_13, %c0_14] : memref<1x4x128xf32, #tpu.memory_space<vmem>>, vector<1x4x128xf32>
    %cst_15 = arith.constant dense<0xFF800000> : vector<1x128xf32>
    %28 = vector.multi_reduction <maximumf>, %27, %cst_15 [1] : vector<1x4x128xf32> to vector<1x128xf32>
    %29 = vector.shape_cast %28 : vector<1x128xf32> to vector<1x1x128xf32>
    %30 = vector.broadcast %29 : vector<1x1x128xf32> to vector<1x4x128xf32>
    %31 = arith.subf %27, %30 : vector<1x4x128xf32>
    %32 = math.exp %31 : vector<1x4x128xf32>
    %cst_16 = arith.constant dense<0.000000e+00> : vector<1x128xf32>
    %33 = vector.multi_reduction <add>, %32, %cst_16 [1] : vector<1x4x128xf32> to vector<1x128xf32>
    %34 = vector.shape_cast %33 : vector<1x128xf32> to vector<1x1x128xf32>
    %35 = math.log %34 : vector<1x1x128xf32>
    %36 = arith.addf %35, %29 : vector<1x1x128xf32>
    %37 = vector.shape_cast %36 : vector<1x1x128xf32> to vector<1x128xf32>
    %38 = tpu.iota {dimensions = array<i32: 1>} : vector<1x4x128xi32>
    %39 = vector.shape_cast %1 : vector<1x128xi32> to vector<1x1x128xi32>
    %40 = vector.broadcast %39 : vector<1x1x128xi32> to vector<1x4x128xi32>
    %41 = arith.cmpi eq, %38, %40 : vector<1x4x128xi32>
    %42 = arith.extui %41 : vector<1x4x128xi1> to vector<1x4x128xi32>
    %43 = arith.sitofp %42 : vector<1x4x128xi32> to vector<1x4x128xf32>
    %44 = arith.mulf %27, %43 : vector<1x4x128xf32>
    %cst_17 = arith.constant dense<0.000000e+00> : vector<1x128xf32>
    %45 = vector.multi_reduction <add>, %44, %cst_17 [1] : vector<1x4x128xf32> to vector<1x128xf32>
    %46 = arith.subf %37, %45 : vector<1x128xf32>
    %cst_18 = arith.constant 0.000000e+00 : f32
    %47 = vector.broadcast %cst_18 : f32 to vector<1x128xf32>
    %48 = arith.select %3, %47, %46 : vector<1x128xi1>, vector<1x128xf32>
    %cst_19 = arith.constant 3.000000e+00 : f32
    %49 = vector.broadcast %cst_19 : f32 to vector<1x1xf32>
    %50 = arith.mulf %49, %7 : vector<1x1xf32>
    %cst_20 = arith.constant 1.270000e+02 : f32
    %51 = vector.broadcast %cst_20 : f32 to vector<1x1xf32>
    %52 = arith.minimumf %50, %51 : vector<1x1xf32>
    %cst_21 = arith.constant -1.000000e+00 : f32
    %53 = vector.broadcast %cst_21 : f32 to vector<1x1xf32>
    %cst_22 = arith.constant dense<0xFF800000> : vector<1xf32>
    %54 = vector.multi_reduction <maximumf>, %48, %cst_22 [1] : vector<1x128xf32> to vector<1xf32>
    %55 = vector.shape_cast %54 : vector<1xf32> to vector<1x1xf32>
    %c0_i32_23 = arith.constant 0 : i32
    %c32_i32 = arith.constant 32 : i32
    %56 = arith.addi %c0_i32_23, %c32_i32 : i32
    %c1_i32 = arith.constant 1 : i32
    %57:2 = scf.for %arg6 = %c0_i32_23 to %56 step %c1_i32 iter_args(%arg7 = %53, %arg8 = %55) -> (vector<1x1xf32>, vector<1x1xf32>)  : i32 {
      %95 = arith.addf %arg7, %arg8 : vector<1x1xf32>
      %cst_36 = arith.constant 5.000000e-01 : f32
      %96 = vector.broadcast %cst_36 : f32 to vector<1x1xf32>
      %97 = arith.mulf %96, %95 : vector<1x1xf32>
      %98 = vector.broadcast %97 : vector<1x1xf32> to vector<1x128xf32>
      %99 = arith.cmpf ogt, %48, %98 : vector<1x128xf32>
      %100 = arith.extui %99 : vector<1x128xi1> to vector<1x128xi32>
      %101 = arith.sitofp %100 : vector<1x128xi32> to vector<1x128xf32>
      %cst_37 = arith.constant dense<0.000000e+00> : vector<1xf32>
      %102 = vector.multi_reduction <add>, %101, %cst_37 [1] : vector<1x128xf32> to vector<1xf32>
      %103 = vector.shape_cast %102 : vector<1xf32> to vector<1x1xf32>
      %104 = arith.cmpf oge, %103, %52 : vector<1x1xf32>
      %105 = arith.select %104, %97, %arg7 : vector<1x1xi1>, vector<1x1xf32>
      %106 = arith.select %104, %arg8, %97 : vector<1x1xi1>, vector<1x1xf32>
      scf.yield %105, %106 : vector<1x1xf32>, vector<1x1xf32>
    }
    %58 = vector.broadcast %57#0 : vector<1x1xf32> to vector<1x128xf32>
    %59 = arith.cmpf ogt, %48, %58 : vector<1x128xf32>
    %cst_24 = arith.constant 1.000000e+00 : f32
    %60 = vector.broadcast %cst_24 : f32 to vector<1x1xf32>
    %61 = arith.cmpf oge, %52, %60 : vector<1x1xf32>
    %62 = vector.broadcast %61 : vector<1x1xi1> to vector<1x128xi1>
    %63 = arith.andi %59, %62 : vector<1x128xi1>
    %64 = arith.ori %3, %63 : vector<1x128xi1>
    %cst_25 = arith.constant 0.000000e+00 : f32
    %65 = vector.broadcast %cst_25 : f32 to vector<1x128xf32>
    %66 = arith.select %64, %46, %65 : vector<1x128xi1>, vector<1x128xf32>
    %67 = vector.shape_cast %66 : vector<1x128xf32> to vector<1x1x128xf32>
    %cst_26 = arith.constant dense<0.000000e+00> : vector<1xf32>
    %68 = vector.multi_reduction <add>, %67, %cst_26 [1, 2] : vector<1x1x128xf32> to vector<1xf32>
    %69 = vector.shape_cast %68 : vector<1xf32> to vector<1x1x1xf32>
    %70 = vector.extract %69[0, 0, 0] : f32 from vector<1x1x1xf32>
    %71 = vector.shape_cast %7 : vector<1x1xf32> to vector<1x1x1xf32>
    %cst_27 = arith.constant dense<0.000000e+00> : vector<1xf32>
    %72 = vector.multi_reduction <add>, %71, %cst_27 [1, 2] : vector<1x1x1xf32> to vector<1xf32>
    %73 = vector.shape_cast %72 : vector<1xf32> to vector<1x1x1xf32>
    %74 = vector.extract %73[0, 0, 0] : f32 from vector<1x1x1xf32>
    %75 = tpu.iota {dimensions = array<i32: 1>} : vector<1x128xi32>
    %c0_i32_28 = arith.constant 0 : i32
    %76 = vector.broadcast %c0_i32_28 : i32 to vector<1x128xi32>
    %77 = arith.cmpi eq, %75, %76 : vector<1x128xi32>
    %cst_29 = arith.constant 0.000000e+00 : f32
    %78 = vector.broadcast %26 : f32 to vector<1x128xf32>
    %79 = vector.broadcast %cst_29 : f32 to vector<1x128xf32>
    %80 = arith.select %77, %78, %79 : vector<1x128xi1>, vector<1x128xf32>
    %c1_i32_30 = arith.constant 1 : i32
    %81 = vector.broadcast %c1_i32_30 : i32 to vector<1x128xi32>
    %82 = arith.cmpi eq, %75, %81 : vector<1x128xi32>
    %cst_31 = arith.constant 0.000000e+00 : f32
    %83 = vector.broadcast %70 : f32 to vector<1x128xf32>
    %84 = vector.broadcast %cst_31 : f32 to vector<1x128xf32>
    %85 = arith.select %82, %83, %84 : vector<1x128xi1>, vector<1x128xf32>
    %86 = arith.addf %80, %85 : vector<1x128xf32>
    %c2_i32 = arith.constant 2 : i32
    %87 = vector.broadcast %c2_i32 : i32 to vector<1x128xi32>
    %88 = arith.cmpi eq, %75, %87 : vector<1x128xi32>
    %cst_32 = arith.constant 0.000000e+00 : f32
    %89 = vector.broadcast %74 : f32 to vector<1x128xf32>
    %90 = vector.broadcast %cst_32 : f32 to vector<1x128xf32>
    %91 = arith.select %88, %89, %90 : vector<1x128xi1>, vector<1x128xf32>
    %92 = arith.addf %86, %91 : vector<1x128xf32>
    %93 = vector.shape_cast %92 : vector<1x128xf32> to vector<1x1x128xf32>
    %c0_33 = arith.constant 0 : index
    %c0_34 = arith.constant 0 : index
    %c0_35 = arith.constant 0 : index
    %94 = vector.load %arg5[%c0_33, %c0_34, %c0_35] : memref<1x1x128xf32, #tpu.memory_space<vmem>>, vector<1x1x128xf32>
    tpu.vector_store %arg5[%c0_33, %c0_34, %c0_35], %93 {strides = array<i32>} : memref<1x1x128xf32, #tpu.memory_space<vmem>>, vector<1x1x128xf32>,
    return
  }
  func.func @transform_0(%arg0: i32) -> (i32, i32, i32) {
    %c0_i32 = arith.constant 0 : i32
    %c0_i32_0 = arith.constant 0 : i32
    %c0_i32_1 = arith.constant 0 : i32
    return %arg0, %c0_i32, %c0_i32_0 : i32, i32, i32
  }
  func.func @transform_1(%arg0: i32) -> (i32, i32, i32) {
    %c0_i32 = arith.constant 0 : i32
    %c0_i32_0 = arith.constant 0 : i32
    %c0_i32_1 = arith.constant 0 : i32
    return %arg0, %c0_i32, %c0_i32_0 : i32, i32, i32
  }
  func.func @transform_2(%arg0: i32) -> (i32, i32, i32) {
    %c0_i32 = arith.constant 0 : i32
    %c0_i32_0 = arith.constant 0 : i32
    %c0_i32_1 = arith.constant 0 : i32
    return %arg0, %c0_i32, %c0_i32_0 : i32, i32, i32
  }
  func.func @transform_3(%arg0: i32) -> (i32, i32, i32) {
    %c0_i32 = arith.constant 0 : i32
    %c0_i32_0 = arith.constant 0 : i32
    %c0_i32_1 = arith.constant 0 : i32
    return %arg0, %c0_i32, %c0_i32_0 : i32, i32, i32
  }
  func.func @transform_4(%arg0: i32) -> (i32, i32, i32) {
    %c0_i32 = arith.constant 0 : i32
    %c0_i32_0 = arith.constant 0 : i32
    %c0_i32_1 = arith.constant 0 : i32
    return %arg0, %c0_i32, %c0_i32_0 : i32, i32, i32
  }
}

</mosaic_0001>

<llo_original>
// kernel: tpu_custom_call.1
$region0: #{tpu_custom_call.1}
  #allocation0 [shape = 'u32[]', space=smem, size = 0x4, offset = 0x4, fixed_abs, tag = 'smem constant byte address 0x4 - core index']
  #allocation1 [shape = 'u32[144,128]{1,0:T(1,128)}', space=vmem, size = 0x12000, scoped, tag = 'internal scratch']
  %s0 = inlined_call_operand.hbm [shape: f32[2,4,128], index: 0, kind: input, shape index: {}]
  %s1 = inlined_call_operand.hbm [shape: f32[2,4,128], index: 1, kind: input, shape index: {}]
  %s2 = inlined_call_operand.hbm [shape: f32[2,4,128], index: 2, kind: input, shape index: {}]
  %s3 = inlined_call_operand.vmem [shape: s32[2,1,128], index: 3, kind: input, shape index: {}]
  %s4 = inlined_call_operand.hbm [shape: f32[2,1,128], index: 4, kind: output, shape index: {}]
  %s5 = sld [smem:[#allocation0]]
  $region68: #{tpu_custom_call.1} parent=0
    _
  %s7 = ssub.s32 1, %s5
  %s8 = scalar_select 0, %s7, %s5
  $region1: #{tpu_custom_call.1} parent=0
    #allocation2 [shape = 'u8[4096]{0}', space=vmem, size = 0x1000, scoped, tag = 'input window, operand 0']
    #allocation3 [shape = 's32[2]{0}', space=sflag, size = 0x8, scoped, tag = 'scoped memory for tpu_custom_call.1']
    #allocation4 [shape = 's32[2]{0}', space=sflag, size = 0x8, scoped, tag = 'scoped memory for tpu_custom_call.1']
    #allocation5 [shape = 'u8[4096]{0}', space=vmem, size = 0x1000, scoped, tag = 'input window, operand 1']
    #allocation6 [shape = 's32[2]{0}', space=sflag, size = 0x8, scoped, tag = 'scoped memory for tpu_custom_call.1']
    #allocation7 [shape = 'u8[4096]{0}', space=vmem, size = 0x1000, scoped, tag = 'input window, operand 2']
    #allocation8 [shape = 'u8[1024]{0}', space=vmem, size = 0x400, scoped, tag = 'output window, operand 0']
    %9 = vsyncpa [#allocation3], 0
    %s10 = scalar_lea.sflag [#allocation3], 1
    %11 = vsyncpa %s10, 0
    %12 = vsyncpa [#allocation6], 0
    %s13 = scalar_lea.sflag [#allocation6], 1
    %14 = vsyncpa %s13, 0
    %15 = vsyncpa [#allocation4], 0
    %s16 = scalar_lea.sflag [#allocation4], 1
    %17 = vsyncpa %s16, 0
    loop: start=0, step=1, limit=4
    $region2: #{tpu_custom_call.1} parent=1 // loop_pre_header
      _
    $region3: #{tpu_custom_call.1} parent=1 // loop_header
      %s19 = sphi 0, %s23
      %p20 = scmp.ge.s32.totalorder %s19, 4
      %s29 = sphi 0, %s31
      %s32 = sphi 0, %s29
      %s33 = sphi 0, %s32
      %s49 = sphi 0, %s33
      %s55 = sphi 0, %s57
      %s58 = sphi 0, %s55
      %s59 = sphi 0, %s58
      %s75 = sphi 0, %s59
      %s81 = sphi 0, %s83
      %s84 = sphi 0, %s81
      %s85 = sphi 0, %s84
      %s101 = sphi 0, %s85
      %s107 = sphi 0, %s109
      %s110 = sphi 0, %s107
      %s111 = sphi 0, %s110
      %s127 = sphi 0, %s111
      %s133 = sphi 0, %s135
      %s136 = sphi 0, %s133
      %s137 = sphi 0, %s136
      %s153 = sphi 0, %s137
    $region4: #{tpu_custom_call.1} parent=1 // loop_header_branch
      %22 = sbr.rel (%p20) target = $region8
    $region5: #{tpu_custom_call.1} parent=1 // loop_body
      %s24 = ssub.s32 %s19, 1
      %s25 = ssub.s32 %s19, 2
      %s26 = sadd.s32 %s19, 1
      %s27 = ssub.s32 %s19, %s26
      %p28 = scmp.eq.s32.totalorder %s27, 0
      %s30 = sadd.s32 %s29, 1
      %s31 = scalar_select %p28, %s29, %s30
      %p34 = pneg %p28
      %p35 = scmp.eq.s32.totalorder %s19, 1
      %p36 = por %p34, %p35
      %p37 = scmp.ne.s32.totalorder %s29, %s32
      %p38 = scmp.eq.s32.totalorder %s19, 0
      %p39 = por %p37, %p38
      %p40 = scmp.ne.s32.totalorder %s29, %s32
      %p41 = scmp.eq.s32.totalorder %s24, 1
      %p42 = por %p40, %p41
      %p43 = scmp.ne.s32.totalorder %s32, %s33
      %p44 = scmp.eq.s32.totalorder %s24, 0
      %p45 = por %p43, %p44
      %p46 = scmp.ne.s32.totalorder %s32, %s33
      %p47 = scmp.eq.s32.totalorder %s25, 1
      %p48 = por %p46, %p47
      %p50 = scmp.ne.s32.totalorder %s33, %s49
      %p51 = scmp.eq.s32.totalorder %s25, 0
      %p52 = por %p50, %p51
      %s53 = ssub.s32 %s19, %s26
      %p54 = scmp.eq.s32.totalorder %s53, 0
      %s56 = sadd.s32 %s55, 1
      %s57 = scalar_select %p54, %s55, %s56
      %p60 = pneg %p54
      %p61 = scmp.eq.s32.totalorder %s19, 1
      %p62 = por %p60, %p61
      %p63 = scmp.ne.s32.totalorder %s55, %s58
      %p64 = scmp.eq.s32.totalorder %s19, 0
      %p65 = por %p63, %p64
      %p66 = scmp.ne.s32.totalorder %s55, %s58
      %p67 = scmp.eq.s32.totalorder %s24, 1
      %p68 = por %p66, %p67
      %p69 = scmp.ne.s32.totalorder %s58, %s59
      %p70 = scmp.eq.s32.totalorder %s24, 0
      %p71 = por %p69, %p70
      %p72 = scmp.ne.s32.totalorder %s58, %s59
      %p73 = scmp.eq.s32.totalorder %s25, 1
      %p74 = por %p72, %p73
      %p76 = scmp.ne.s32.totalorder %s59, %s75
      %p77 = scmp.eq.s32.totalorder %s25, 0
      %p78 = por %p76, %p77
      %s79 = ssub.s32 %s19, %s26
      %p80 = scmp.eq.s32.totalorder %s79, 0
      %s82 = sadd.s32 %s81, 1
      %s83 = scalar_select %p80, %s81, %s82
      %p86 = pneg %p80
      %p87 = scmp.eq.s32.totalorder %s19, 1
      %p88 = por %p86, %p87
      %p89 = scmp.ne.s32.totalorder %s81, %s84
      %p90 = scmp.eq.s32.totalorder %s19, 0
      %p91 = por %p89, %p90
      %p92 = scmp.ne.s32.totalorder %s81, %s84
      %p93 = scmp.eq.s32.totalorder %s24, 1
      %p94 = por %p92, %p93
      %p95 = scmp.ne.s32.totalorder %s84, %s85
      %p96 = scmp.eq.s32.totalorder %s24, 0
      %p97 = por %p95, %p96
      %p98 = scmp.ne.s32.totalorder %s84, %s85
      %p99 = scmp.eq.s32.totalorder %s25, 1
      %p100 = por %p98, %p99
      %p102 = scmp.ne.s32.totalorder %s85, %s101
      %p103 = scmp.eq.s32.totalorder %s25, 0
      %p104 = por %p102, %p103
      %s105 = ssub.s32 %s19, %s26
      %p106 = scmp.eq.s32.totalorder %s105, 0
      %s108 = sadd.s32 %s107, 1
      %s109 = scalar_select %p106, %s107, %s108
      %p112 = pneg %p106
      %p113 = scmp.eq.s32.totalorder %s19, 1
      %p114 = por %p112, %p113
      %p115 = scmp.ne.s32.totalorder %s107, %s110
      %p116 = scmp.eq.s32.totalorder %s19, 0
      %p117 = por %p115, %p116
      %p118 = scmp.ne.s32.totalorder %s107, %s110
      %p119 = scmp.eq.s32.totalorder %s24, 1
      %p120 = por %p118, %p119
      %p121 = scmp.ne.s32.totalorder %s110, %s111
      %p122 = scmp.eq.s32.totalorder %s24, 0
      %p123 = por %p121, %p122
      %p124 = scmp.ne.s32.totalorder %s110, %s111
      %p125 = scmp.eq.s32.totalorder %s25, 1
      %p126 = por %p124, %p125
      %p128 = scmp.ne.s32.totalorder %s111, %s127
      %p129 = scmp.eq.s32.totalorder %s25, 0
      %p130 = por %p128, %p129
      %s131 = ssub.s32 %s19, %s26
      %p132 = scmp.eq.s32.totalorder %s131, 0
      %s134 = sadd.s32 %s133, 1
      %s135 = scalar_select %p132, %s133, %s134
      %p138 = pneg %p132
      %p139 = scmp.eq.s32.totalorder %s19, 1
      %p140 = por %p138, %p139
      %p141 = scmp.ne.s32.totalorder %s133, %s136
      %p142 = scmp.eq.s32.totalorder %s19, 0
      %p143 = por %p141, %p142
      %p144 = scmp.ne.s32.totalorder %s133, %s136
      %p145 = scmp.eq.s32.totalorder %s24, 1
      %p146 = por %p144, %p145
      %p147 = scmp.ne.s32.totalorder %s136, %s137
      %p148 = scmp.eq.s32.totalorder %s24, 0
      %p149 = por %p147, %p148
      %p150 = scmp.ne.s32.totalorder %s136, %s137
      %p151 = scmp.eq.s32.totalorder %s25, 1
      %p152 = por %p150, %p151
      %p154 = scmp.ne.s32.totalorder %s137, %s153
      %p155 = scmp.eq.s32.totalorder %s25, 0
      %p156 = por %p154, %p155
      %p157 = scmp.le.s32.totalorder 1, %s19
      %p158 = scmp.lt.s32.totalorder %s19, 3
      %p159 = pnand %p157, %p158
      %p160 = pneg %p159
      // Predicated region
      $region9: #{tpu_custom_call.1} parent=5 // pred_check
        _
      $region10: #{tpu_custom_call.1} parent=5 // pred_check_branch
        %162 = sbr.rel (%p159) target = $region12
      $region11: #{tpu_custom_call.1} parent=5 // pred_region
        %s163 = ssub.s32 %s19, 1
      $region12: #{tpu_custom_call.1} parent=5 // pred_fallthru
        _
      %p164 = scmp.lt.s32.totalorder %s19, 2
      // Predicated region
      $region13: #{tpu_custom_call.1} parent=5 // pred_check
        %p165 = pneg %p164
      $region14: #{tpu_custom_call.1} parent=5 // pred_check_branch
        %167 = sbr.rel (%p165) target = $region16
      $region15: #{tpu_custom_call.1} parent=5 // pred_region
        // Predicated region
        $region17: #{tpu_custom_call.1} parent=15 // pred_check
          %p168 = pneg %p39
        $region18: #{tpu_custom_call.1} parent=15 // pred_check_branch
          %170 = sbr.rel (%p168) target = $region20
        $region19: #{tpu_custom_call.1} parent=15 // pred_region
          %s171 = sand.u32 %s29, 1
          %s172 = scalar_lea.sflag [#allocation3], %s171
          %s173 = sand.u32 %s29, 1
          %s174 = smul.addr %s173, 4
          %s175 = scalar_lea.vmem [#allocation2], %s174
          %s177 = ssub.s32 64, 64
          %178 = vsyncadd %s172, %s177
          %s179 = smul.addr %s19, 64
          %s180 = scalar_lea.hbm %s0, %s179
          %s182 = sshll.u32 %s175, 4
          %s183 = int_to_ptr.vmem [resolvable:$true] %s182
          %185 = dma.hbm_to_vmem [thread:$0]  %s180, 64, %s183, %s172
        $region20: #{tpu_custom_call.1} parent=15 // pred_fallthru
          _
        // Predicated region
        $region21: #{tpu_custom_call.1} parent=15 // pred_check
          %p186 = pneg %p65
        $region22: #{tpu_custom_call.1} parent=15 // pred_check_branch
          %188 = sbr.rel (%p186) target = $region24
        $region23: #{tpu_custom_call.1} parent=15 // pred_region
          %s189 = sand.u32 %s19, 1
          %s190 = scalar_lea.sflag [#allocation6], %s189
          %s191 = sand.u32 %s55, 1
          %s192 = smul.addr %s191, 4
          %s193 = scalar_lea.vmem [#allocation5], %s192
          %s195 = ssub.s32 64, 64
          %196 = vsyncadd %s190, %s195
          %s197 = smul.addr %s19, 64
          %s198 = scalar_lea.hbm %s1, %s197
          %s200 = sshll.u32 %s193, 4
          %s201 = int_to_ptr.vmem [resolvable:$true] %s200
          %203 = dma.hbm_to_vmem [thread:$0]  %s198, 64, %s201, %s190
        $region24: #{tpu_custom_call.1} parent=15 // pred_fallthru
          _
        // Predicated region
        $region25: #{tpu_custom_call.1} parent=15 // pred_check
          %p204 = pneg %p91
        $region26: #{tpu_custom_call.1} parent=15 // pred_check_branch
          %206 = sbr.rel (%p204) target = $region28
        $region27: #{tpu_custom_call.1} parent=15 // pred_region
          %s207 = sand.u32 %s19, 1
          %s208 = scalar_lea.sflag [#allocation6], %s207
          %s209 = sand.u32 %s81, 1
          %s210 = smul.addr %s209, 4
          %s211 = scalar_lea.vmem [#allocation7], %s210
          %s213 = ssub.s32 64, 64
          %214 = vsyncadd %s208, %s213
          %s215 = smul.addr %s19, 64
          %s216 = scalar_lea.hbm %s2, %s215
          %s218 = sshll.u32 %s211, 4
          %s219 = int_to_ptr.vmem [resolvable:$true] %s218
          %221 = dma.hbm_to_vmem [thread:$0]  %s216, 64, %s219, %s208
        $region28: #{tpu_custom_call.1} parent=15 // pred_fallthru
          _
        // Predicated region
        $region29: #{tpu_custom_call.1} parent=15 // pred_check
          %p222 = pneg %p117
        $region30: #{tpu_custom_call.1} parent=15 // pred_check_branch
          %224 = sbr.rel (%p222) target = $region32
        $region31: #{tpu_custom_call.1} parent=15 // pred_region
          %p225 = scmp.lt.s32.totalorder %s19, 1
          %s226 = scalar_select %p225, %s19, 1
          %s227 = scalar_lea.vmem %s3, %s226
        $region32: #{tpu_custom_call.1} parent=15 // pred_fallthru
          _
      $region16: #{tpu_custom_call.1} parent=5 // pred_fallthru
        _
      %p228 = scmp.le.s32.totalorder 1, %s19
      %p229 = scmp.lt.s32.totalorder %s19, 3
      %p230 = pnand %p228, %p229
      %p231 = pneg %p230
      // Predicated region
      $region33: #{tpu_custom_call.1} parent=5 // pred_check
        _
      $region34: #{tpu_custom_call.1} parent=5 // pred_check_branch
        %233 = sbr.rel (%p230) target = $region36
      $region35: #{tpu_custom_call.1} parent=5 // pred_region
        %s234 = ssub.s32 %s19, 1
        %s235 = sand.u32 %s32, 1
        %s236 = scalar_lea.sflag [#allocation3], %s235
        %s237 = sand.u32 %s32, 1
        %s238 = smul.addr %s237, 4
        %s239 = scalar_lea.vmem [#allocation2], %s238
        // Predicated region
        $region37: #{tpu_custom_call.1} parent=35 // pred_check
          %p240 = pneg %p45
        $region38: #{tpu_custom_call.1} parent=35 // pred_check_branch
          %242 = sbr.rel (%p240) target = $region40
        $region39: #{tpu_custom_call.1} parent=35 // pred_region
          %243 = dma.done %s236, 64
        $region40: #{tpu_custom_call.1} parent=35 // pred_fallthru
          _
        %s244 = sand.u32 %s24, 1
        %s245 = scalar_lea.sflag [#allocation6], %s244
        %s246 = sand.u32 %s58, 1
        %s247 = smul.addr %s246, 4
        %s248 = scalar_lea.vmem [#allocation5], %s247
        // Predicated region
        $region41: #{tpu_custom_call.1} parent=35 // pred_check
          %p249 = pneg %p71
        $region42: #{tpu_custom_call.1} parent=35 // pred_check_branch
          %251 = sbr.rel (%p249) target = $region44
        $region43: #{tpu_custom_call.1} parent=35 // pred_region
          %252 = dma.done %s245, 64
        $region44: #{tpu_custom_call.1} parent=35 // pred_fallthru
          _
        %s253 = sand.u32 %s24, 1
        %s254 = scalar_lea.sflag [#allocation6], %s253
        %s255 = sand.u32 %s84, 1
        %s256 = smul.addr %s255, 4
        %s257 = scalar_lea.vmem [#allocation7], %s256
        // Predicated region
        $region45: #{tpu_custom_call.1} parent=35 // pred_check
          %p258 = pneg %p97
        $region46: #{tpu_custom_call.1} parent=35 // pred_check_branch
          %260 = sbr.rel (%p258) target = $region48
        $region47: #{tpu_custom_call.1} parent=35 // pred_region
          %261 = dma.done %s254, 64
        $region48: #{tpu_custom_call.1} parent=35 // pred_fallthru
          _
        %s262 = sand.u32 %s32, 1
        %s263 = scalar_lea.sflag [#allocation3], %s262
        %s264 = sand.u32 %s32, 1
        %s265 = smul.addr %s264, 4
        %s266 = scalar_lea.vmem [#allocation2], %s265
        %p267 = pneg %p45
        %p268 = pneg %p42
        %s269 = sand.u32 %s24, 1
        %s270 = scalar_lea.sflag [#allocation6], %s269
        %s271 = sand.u32 %s58, 1
        %s272 = smul.addr %s271, 4
        %s273 = scalar_lea.vmem [#allocation5], %s272
        %p274 = pneg %p71
        %p275 = pneg %p68
        %s276 = sand.u32 %s24, 1
        %s277 = scalar_lea.sflag [#allocation6], %s276
        %s278 = sand.u32 %s84, 1
        %s279 = smul.addr %s278, 4
        %s280 = scalar_lea.vmem [#allocation7], %s279
        %p281 = pneg %p97
        %p282 = pneg %p94
        %p283 = scmp.lt.s32.totalorder %s24, 1
        %s284 = scalar_select %p283, %s24, 1
        %s285 = scalar_lea.vmem %s3, %s284
        %p286 = pneg %p123
        %p287 = pneg %p120
        %p288 = pneg %p149
        %p289 = pneg %p146
        %s290 = sand.u32 %s136, 1
        %s291 = scalar_lea.sflag [#allocation4], %s290
        %s292 = sand.u32 %s136, 1
        %s293 = scalar_lea.vmem [#allocation8], %s292
        %p294 = scmp.lt.s32.totalorder %s24, 1
        %s295 = scalar_select %p294, %s24, 1
        %s296 = scalar_lea.vmem %s3, %s295
        %v297 = vld [vmem:[%s296] sm:$0x1]
        %vm298 = vcmp.gt.s32.totalorder %v297, 0
        %v299 = vsel %vm298, 1, 0
        %v300 = vcvt.s32.f32 %v299
        %vm301 = vcmask 1040384
        %v302 = vsel %vm301, %v300, 0.0
        %303 = vadd.xlane.f32.xlu0 %v302
        %v304 = vpop.xlane.xlu0 %303
        %v305 = vld [vmem:[%s239] sm:$0xf]
        %v306 = vld [vmem:[%s248] sm:$0xf]
        %v307 = vsub.f32 %v305, %v306
        %v308 = vand.u32 2147483647, %v307
        %vm309 = vcmp.lt.f32.partialorder %v308, 1.0
        %v310 = vmul.f32 %v307, 0.5
        %v311 = vmul.f32 %v310, %v307
        %v312 = vsub.f32 %v308, 0.5
        %v313 = vsel %vm309, %v311, %v312
        %v315 = vlaneseq
        %v316 = vshrl.u32 %v315, 7
        %v317 = vsub.s32 0, %v316
        %v318 = vrot.slane %v300, %v317
        %v320 = vmul.f32 %v313, %v318
        %vm321 = vcmask 1043456
        %v322 = vsel %vm321, %v320, 0.0
        %323 = vadd.xlane.f32.xlu0 %v322
        %v324 = vpop.xlane.xlu0 %323
        %v325 = vrot.slane %v324, 4
        %v326 = vadd.f32 %v324, %v325
        %v327 = vrot.slane %v326, 2
        %v328 = vadd.f32 %v326, %v327
        %v329 = vrot.slane %v328, 1
        %v330 = vadd.f32 %v328, %v329
        %s331 = vtos %v330
        %v332 = vld [vmem:[%s257] sm:$0xf]
        %v333 = vsel %vm321, %v332, -inf
        %v334 = vrot.slane %v333, 4
        %v335 = vmax.f32 %v333, %v334
        %v336 = vrot.slane %v335, 2
        %v337 = vmax.f32 %v335, %v336
        %v338 = vrot.slane %v337, 1
        %v339 = vmax.f32 %v337, %v338
        %v340 = vsub.f32 %v332, %v339
        %v341 = vmul.f32 %v340, 1.442695
        %v342 = vpow.pop %v341
        %v343 = vsel %vm321, %v342, 0.0
        %v344 = vrot.slane %v343, 4
        %v345 = vadd.f32 %v343, %v344
        %v346 = vrot.slane %v345, 2
        %v347 = vadd.f32 %v345, %v346
        %v348 = vrot.slane %v347, 1
        %v349 = vadd.f32 %v347, %v348
        %v350 = vlog2.pop %v349
        %v351 = vmul.f32 %v350, 0.6931472
        %v352 = vadd.f32 %v351, %v339
        %v353 = vlaneseq
        %v354 = vshrl.u32 %v353, 7
        %v355 = vlaneseq
        %v356 = vshrl.u32 %v355, 7
        %v357 = vsub.s32 0, %v356
        %v358 = vrot.slane %v297, %v357
        %vm359 = vcmp.eq.s32.totalorder %v354, %v358
        %v360 = vsel %vm359, 1, 0
        %v361 = vcvt.s32.f32 %v360
        %v362 = vmul.f32 %v332, %v361
        %v363 = vsel %vm321, %v362, 0.0
        %v364 = vrot.slane %v363, 4
        %v365 = vadd.f32 %v363, %v364
        %v366 = vrot.slane %v365, 2
        %v367 = vadd.f32 %v365, %v366
        %v368 = vrot.slane %v367, 1
        %v369 = vadd.f32 %v367, %v368
        %v370 = vsub.f32 %v352, %v369
        %v371 = vsel %vm298, 0.0, %v370
        %v372 = vmul.f32 %v304, 3.0
        %v373 = vmin.f32 %v372, 127.0
        %v374 = vsel %vm301, %v371, -inf
        %375 = vmax.xlane.f32.xlu0 %v374
        %v376 = vpop.xlane.xlu0 %375
        loop: start=0, step=1, limit=32
        $region49: #{tpu_custom_call.1} parent=35 // loop_pre_header
          _
        $region50: #{tpu_custom_call.1} parent=35 // loop_header
          %s378 = sphi 0, %s382
          %p379 = scmp.ge.s32.totalorder %s378, 32
          %v383 = vphi -1.0, %v394
          %v384 = vphi %v376, %v395
        $region51: #{tpu_custom_call.1} parent=35 // loop_header_branch
          %381 = sbr.rel (%p379) target = $region55
        $region52: #{tpu_custom_call.1} parent=35 // loop_body
          %v385 = vadd.f32 %v383, %v384
          %v386 = vmul.f32 %v385, 0.5
          %vm387 = vcmp.gt.f32.partialorder %v371, %v386
          %v388 = vsel %vm387, 1, 0
          %v389 = vcvt.s32.f32 %v388
          %v390 = vsel %vm301, %v389, 0.0
          %391 = vadd.xlane.f32.xlu0 %v390
          %v392 = vpop.xlane.xlu0 %391
          %vm393 = vcmp.ge.f32.partialorder %v392, %v373
          %v394 = vsel %vm393, %v386, %v383
          %v395 = vsel %vm393, %v384, %v386
        $region53: #{tpu_custom_call.1} parent=35 // loop_footer
          %s382 = sadd.s32 1, %s378
        $region54: #{tpu_custom_call.1} parent=35 // loop_footer_branch
          %377 = sbr.rel target = $region50
        $region55: #{tpu_custom_call.1} parent=35 // loop_exit
          _
        %vm396 = vcmp.gt.f32.partialorder %v371, %v383
        %vm397 = vcmp.ge.f32.partialorder %v373, 1.0
        %v398 = vsel %vm397, 1, 0
        %vm399 = vcmp.eq.s32.totalorder %v398, 1
        %vm400 = vmand %vm396, %vm399
        %vm401 = vmor %vm298, %vm400
        %v402 = vsel %vm401, %v370, 0.0
        %v403 = vsel %vm301, %v402, 0.0
        %404 = vadd.xlane.f32.xlu0 %v403
        %v405 = vpop.xlane.xlu0 %404
        %v406 = vrot.slane %v405, 4
        %v407 = vadd.f32 %v405, %v406
        %v408 = vrot.slane %v407, 2
        %v409 = vadd.f32 %v407, %v408
        %v410 = vrot.slane %v409, 1
        %v411 = vadd.f32 %v409, %v410
        %s412 = vtos %v411
        %v413 = vadd.f32 %v304, 0.0
        %s414 = vtos %v413
        %v415 = vlaneseq
        %v416 = vand.u32 %v415, 127
        %vm417 = vcmp.eq.s32.totalorder %v416, 0
        %v418 = vstv %s331
        %v419 = vsel %vm417, %v418, 0.0
        %vm420 = vcmp.eq.s32.totalorder %v416, 1
        %v421 = vstv %s412
        %v422 = vsel %vm420, %v421, 0.0
        %v423 = vadd.f32 %v419, %v422
        %vm424 = vcmp.eq.s32.totalorder %v416, 2
        %v425 = vstv %s414
        %v426 = vsel %vm424, %v425, 0.0
        %v427 = vadd.f32 %v423, %v426
        %428 = vst [vmem:[%s293] sm:$0x1] %v427
        %s429 = sand.u32 %s136, 1
        %s430 = scalar_lea.sflag [#allocation4], %s429
        %s431 = sand.u32 %s136, 1
        %s432 = scalar_lea.vmem [#allocation8], %s431
        // Predicated region
        $region56: #{tpu_custom_call.1} parent=35 // pred_check
          %p433 = pneg %p146
        $region57: #{tpu_custom_call.1} parent=35 // pred_check_branch
          %435 = sbr.rel (%p433) target = $region59
        $region58: #{tpu_custom_call.1} parent=35 // pred_region
          %s437 = ssub.s32 16, 16
          %438 = vsyncadd %s430, %s437
          %s439 = smul.addr %s24, 16
          %s440 = scalar_lea.hbm %s4, %s439
          %s442 = sshll.u32 %s432, 4
          %s443 = int_to_ptr.vmem [resolvable:$true] %s442
          %445 = dma.vmem_to_hbm [thread:$0]  %s443, 16, %s440, %s430
        $region59: #{tpu_custom_call.1} parent=35 // pred_fallthru
          _
      $region36: #{tpu_custom_call.1} parent=5 // pred_fallthru
        _
      %p446 = scmp.le.s32.totalorder 2, %s19
      // Predicated region
      $region60: #{tpu_custom_call.1} parent=5 // pred_check
        %p447 = pneg %p446
      $region61: #{tpu_custom_call.1} parent=5 // pred_check_branch
        %449 = sbr.rel (%p447) target = $region63
      $region62: #{tpu_custom_call.1} parent=5 // pred_region
        %s450 = ssub.s32 %s19, 2
        // Predicated region
        $region64: #{tpu_custom_call.1} parent=62 // pred_check
          %p451 = pneg %p152
        $region65: #{tpu_custom_call.1} parent=62 // pred_check_branch
          %453 = sbr.rel (%p451) target = $region67
        $region66: #{tpu_custom_call.1} parent=62 // pred_region
          %s454 = sand.u32 %s137, 1
          %s455 = scalar_lea.sflag [#allocation4], %s454
          %s456 = sand.u32 %s137, 1
          %s457 = scalar_lea.vmem [#allocation8], %s456
          %458 = dma.done %s455, 16
        $region67: #{tpu_custom_call.1} parent=62 // pred_fallthru
          _
      $region63: #{tpu_custom_call.1} parent=5 // pred_fallthru
        _
    $region6: #{tpu_custom_call.1} parent=1 // loop_footer
      %s23 = sadd.s32 1, %s19
    $region7: #{tpu_custom_call.1} parent=1 // loop_footer_branch
      %18 = sbr.rel target = $region3
    $region8: #{tpu_custom_call.1} parent=1 // loop_exit
      _
    %459 = vsyncpa [#allocation3], 1
    %s460 = scalar_lea.sflag [#allocation3], 1
    %461 = vsyncpa %s460, 1
    %462 = vsyncpa [#allocation6], 1
    %s463 = scalar_lea.sflag [#allocation6], 1
    %464 = vsyncpa %s463, 1
    %465 = vsyncpa [#allocation4], 1
    %s466 = scalar_lea.sflag [#allocation4], 1
    %467 = vsyncpa %s466, 1

</llo_original>
